<compile_context>
chip_gen: v7x
topology: tpu7x:2x2x1
jax: 0.10.0
libtpu: 0.0.40
codegen_flags: <defaults>
</compile_context>

<pallas_src>
import functools

import jax
import jax.numpy as jnp
import numpy as np
from jax.experimental import pallas as pl
from jax.experimental.pallas import tpu as pltpu


_SMALL_SLICE_BYTES = 2 << 20        # whole-(H, W)-slice path below this size
_BLOCK_TARGET_BYTES = 2 << 20       # ~2 MiB of padded VMEM per pipelined buffer
_DEFAULT_VMEM_LIMIT = 32 * 1024 * 1024

_FLAT_PATH_OK = {}                  # (tbc, H, W, dtype) -> bool  (probe cache)


# ----------------------------------------------------------------------------
# Hardware / sizing helpers
# ----------------------------------------------------------------------------
def _roundup(x, m):
    return (x + m - 1) // m * m


def _sublane(dtype):
    itemsize = np.dtype(dtype).itemsize
    return 8 * max(1, 4 // itemsize)        # 8 (f32) / 16 (bf16) / 32 (int8)


def _padded_block_bytes(block_shape, dtype):
    """VMEM bytes a block really occupies (last two dims are tile-padded)."""
    dims = [int(d) for d in block_shape]
    dims[-1] = _roundup(dims[-1], 128)
    if len(dims) >= 2:
        dims[-2] = _roundup(dims[-2], _sublane(dtype))
    n = 1
    for d in dims:
        n *= d
    return n * np.dtype(dtype).itemsize


@functools.lru_cache(maxsize=None)
def _num_tensorcores():
    try:
        info = pltpu.get_tpu_info()
        for attr in ("num_cores", "num_tensorcores", "tensor_core_count",
                     "cores_per_chip"):
            v = getattr(info, attr, None)
            if isinstance(v, int) and v > 0:
                return v
    except Exception:
        pass
    try:
        if "v7" in jax.devices()[0].device_kind.lower():
            return 2
    except Exception:
        pass
    return 1


@functools.lru_cache(maxsize=None)
def _vmem_limit_bytes():
    # ~half of physical VMEM, capped at 64 MiB: 32 MiB on v7x (64 MiB phys),
    # 64 MiB on v5e/v6e (128 MiB phys), 32 MiB if the query is unavailable.
    try:
        cap = int(pltpu.get_tpu_info().vmem_capacity_bytes)
        return max(16 * 1024 * 1024, min(cap // 2, 64 * 1024 * 1024))
    except Exception:
        return _DEFAULT_VMEM_LIMIT


def _choose_tbc_flat(bc, row_bytes, sub, min_steps,
                     target=_BLOCK_TARGET_BYTES):
    """Rows per block for the lane-dense (BC, H*W) path.

    Second-minor block dim must be a multiple of the sublane count or equal
    to the full dim, so tbc is kept a multiple of `sub` (or == bc).
    """
    if bc <= sub:
        return bc
    tbc = max(sub, (int(target) // max(1, row_bytes)) // sub * sub)
    if min_steps > 1:
        cap = (bc // min_steps) // sub * sub
        if cap >= sub:
            tbc = min(tbc, cap)
    return max(sub, min(tbc, (bc // sub) * sub))


def _choose_tbc_3d(bc, slice_bytes, min_steps, target=_BLOCK_TARGET_BYTES):
    """Slices per block for the (TBC, H, W) whole-slice path (padded bytes)."""
    tbc = min(bc, max(1, int(target) // max(1, slice_bytes)))
    if min_steps > 1 and bc >= min_steps:
        tbc = min(tbc, bc // min_steps)
    steps = pl.cdiv(bc, tbc)
    return max(1, pl.cdiv(bc, steps))


def _choose_tri_tile(h):
    """Largest (multiple-of-128) tile edge that divides H, else None."""
    for t in (512, 256, 128):
        if h % t == 0:
            return t
    return None


def _choose_fallback_tile(h):
    """Tile edge minimizing padded traffic when no clean divisor exists."""
    best_t, best_pad = 128, None
    for t in (128, 256, 512):
        pad = pl.cdiv(h, t) * t
        if best_pad is None or pad < best_pad or (pad == best_pad and t > best_t):
            best_t, best_pad = t, pad
    return best_t


def _cost(bc, h, w, itemsize, rw_factor):
    return pl.CostEstimate(flops=2 * bc * h * w, transcendentals=0,
                           bytes_accessed=rw_factor * bc * h * w * itemsize)


# ----------------------------------------------------------------------------
# Kernels
# ----------------------------------------------------------------------------
def _symm_batched_kernel(x_ref, o_ref):
    # (TBC, H, W) block: symmetrize every (H, W) slice over its last two axes.
    x = x_ref[...].astype(jnp.float32)
    o_ref[...] = ((x + jnp.swapaxes(x, -1, -2)) * 0.5).astype(o_ref.dtype)


def _symm_flat_kernel(x_ref, o_ref, *, h, w):
    # Lane-dense block (TBC, H*W): relayout to (TBC, H, W) in VMEM, symmetrize,
    # flatten back.  The VMEM-local relayout hides under HBM slack.
    x = x_ref[...].astype(jnp.float32)
    tbc = x.shape[0]
    xm = x.reshape(tbc, h, w)
    y = (xm + jnp.swapaxes(xm, -1, -2)) * 0.5
    o_ref[...] = y.reshape(tbc, h * w).astype(o_ref.dtype)


def _symm_tiled_kernel(a_ref, b_ref, o_ref):
    # a = x[bc, iT:(i+1)T, jT:(j+1)T], b = x[bc, jT:(j+1)T, iT:(i+1)T]
    a = a_ref[...].astype(jnp.float32)
    b = b_ref[...].astype(jnp.float32)
    o_ref[...] = ((a + jnp.swapaxes(b, -1, -2)) * 0.5).astype(o_ref.dtype)


def _symm_tri_kernel(bc_ref, ti_ref, tj_ref, a_ref, b_ref, o_hbm,
                     t_ij, t_ji, sems, *, tile):
    # Triangular schedule: one grid step per (bc, i <= j) tile pair.  Reads
    # x[i,j] and x[j,i] once each, writes o[i,j] and (off-diagonal) o[j,i]
    # with manual DMA into the ANY-space output.
    q = pl.program_id(0)
    bc = bc_ref[q]
    i = ti_ref[q]
    j = tj_ref[q]

    a = a_ref[...].astype(jnp.float32)   # (T, T) = x[bc, iT:, jT:]
    b = b_ref[...].astype(jnp.float32)   # (T, T) = x[bc, jT:, iT:]

    t_ij[...] = ((a + jnp.swapaxes(b, -1, -2)) * 0.5).astype(t_ij.dtype)
    cp_ij = pltpu.make_async_copy(
        t_ij,
        o_hbm.at[bc, pl.ds(i * tile, tile), pl.ds(j * tile, tile)],
        sems.at[0])
    cp_ij.start()

    @pl.when(i != j)
    def _():
        t_ji[...] = ((b + jnp.swapaxes(a, -1, -2)) * 0.5).astype(t_ji.dtype)
        cp_ji = pltpu.make_async_copy(
            t_ji,
            o_hbm.at[bc, pl.ds(j * tile, tile), pl.ds(i * tile, tile)],
            sems.at[1])
        cp_ji.start()
        cp_ji.wait()

    cp_ij.wait()


# ----------------------------------------------------------------------------
# pallas_call wrappers for each path
# ----------------------------------------------------------------------------
def _call_batched(xf, tbc, vmem_limit, cost):
    BC, H, W = xf.shape
    return pl.pallas_call(
        _symm_batched_kernel,
        out_shape=jax.ShapeDtypeStruct((BC, H, W), xf.dtype),
        grid=(pl.cdiv(BC, tbc),),
        in_specs=[pl.BlockSpec((tbc, H, W), lambda i: (i, 0, 0))],
        out_specs=pl.BlockSpec((tbc, H, W), lambda i: (i, 0, 0)),
        compiler_params=pltpu.CompilerParams(
            dimension_semantics=("parallel",), vmem_limit_bytes=vmem_limit),
        cost_estimate=cost,
    )(xf)


def _call_flat(xf2, tbc, h, w, vmem_limit, cost):
    BC, HW = xf2.shape
    kern = functools.partial(_symm_flat_kernel, h=h, w=w)
    return pl.pallas_call(
        kern,
        out_shape=jax.ShapeDtypeStruct((BC, HW), xf2.dtype),
        grid=(pl.cdiv(BC, tbc),),
        in_specs=[pl.BlockSpec((tbc, HW), lambda i: (i, 0))],
        out_specs=pl.BlockSpec((tbc, HW), lambda i: (i, 0)),
        compiler_params=pltpu.CompilerParams(
            dimension_semantics=("parallel",), vmem_limit_bytes=vmem_limit),
        cost_estimate=cost,
    )(xf2)


def _flat_path_supported(tbc, h, w, dtype, vmem_limit):
    """One-time compile probe: does the in-kernel (TBC, H*W)->(TBC, H, W)
    relayout lower on this toolchain?  Cached per block configuration."""
    key = (int(tbc), int(h), int(w), str(np.dtype(dtype)))
    hit = _FLAT_PATH_OK.get(key)
    if hit is not None:
        return hit
    try:
        z = jnp.zeros((tbc, h * w), dtype=dtype)
        jax.block_until_ready(_call_flat(z, tbc, h, w, vmem_limit, None))
        ok = True
    except Exception:
        ok = False
    _FLAT_PATH_OK[key] = ok
    return ok


def _call_triangular(xf, T, vmem_limit, cost):
    BC, H, W = xf.shape
    nb = H // T
    pairs = [(i, j) for i in range(nb) for j in range(i, nb)]
    npairs = len(pairs)
    steps = BC * npairs

    bc_idx = np.repeat(np.arange(BC, dtype=np.int32), npairs)
    i_idx = np.tile(np.array([p[0] for p in pairs], dtype=np.int32), BC)
    j_idx = np.tile(np.array([p[1] for p in pairs], dtype=np.int32), BC)

    kern = functools.partial(_symm_tri_kernel, tile=T)
    gs = pltpu.PrefetchScalarGridSpec(
        num_scalar_prefetch=3,
        grid=(steps,),
        in_specs=[
            pl.BlockSpec((None, T, T),
                         lambda q, bcs, iis, jjs: (bcs[q], iis[q], jjs[q])),
            pl.BlockSpec((None, T, T),
                         lambda q, bcs, iis, jjs: (bcs[q], jjs[q], iis[q])),
        ],
        out_specs=pl.BlockSpec(memory_space=pl.ANY),
        scratch_shapes=[
            pltpu.VMEM((T, T), xf.dtype),
            pltpu.VMEM((T, T), xf.dtype),
            pltpu.SemaphoreType.DMA((2,)),
        ],
    )
    return pl.pallas_call(
        kern,
        out_shape=jax.ShapeDtypeStruct((BC, H, W), xf.dtype),
        grid_spec=gs,
        compiler_params=pltpu.CompilerParams(
            dimension_semantics=("parallel",), vmem_limit_bytes=vmem_limit),
        cost_estimate=cost,
    )(jnp.asarray(bc_idx), jnp.asarray(i_idx), jnp.asarray(j_idx), xf, xf)


def _call_tiled_fallback(xf, T, vmem_limit, cost):
    BC, H, W = xf.shape
    return pl.pallas_call(
        _symm_tiled_kernel,
        out_shape=jax.ShapeDtypeStruct((BC, H, W), xf.dtype),
        grid=(BC, pl.cdiv(H, T), pl.cdiv(W, T)),
        in_specs=[
            pl.BlockSpec((None, T, T), lambda bc, i, j: (bc, i, j)),
            pl.BlockSpec((None, T, T), lambda bc, i, j: (bc, j, i)),
        ],
        out_specs=pl.BlockSpec((None, T, T), lambda bc, i, j: (bc, i, j)),
        compiler_params=pltpu.CompilerParams(
            dimension_semantics=("parallel", "parallel", "parallel"),
            vmem_limit_bytes=vmem_limit),
        cost_estimate=cost,
    )(xf, xf)


# ----------------------------------------------------------------------------
# Public wrapper
# ----------------------------------------------------------------------------
def symm(x, *, block_hw=None):
    """(x + x.transpose(-1, -2)) / 2 for an NCHW tensor, via Pallas.

    block_hw: force the tiled path with the given tile edge (must be a
              positive multiple of 128).  Default: automatic path selection.
    """
    B, C, H, W = x.shape
    assert H == W, "Symm with pattern 'b c h w -> b c w h' requires H == W"
    if not jnp.issubdtype(x.dtype, jnp.floating):
        raise TypeError(
            f"symm: floating dtype required (PyTorch's /2 promotes to float); got {x.dtype}")
    if block_hw is not None:
        block_hw = int(block_hw)
        assert block_hw > 0 and block_hw % 128 == 0, \
            "block_hw must be a positive multiple of 128"

    BC = B * C
    itemsize = np.dtype(x.dtype).itemsize
    xf = x.reshape(BC, H, W)
    vmem_limit = _vmem_limit_bytes()
    cores = _num_tensorcores()
    min_steps = 2 * cores if cores > 1 else 1

    slice_bytes = H * W * itemsize
    use_tiled = (block_hw is not None) or (slice_bytes > _SMALL_SLICE_BYTES)

    if use_tiled:
        T = block_hw if block_hw is not None else (
            _choose_tri_tile(H) or _choose_fallback_tile(H))
        if H % T == 0:
            # Triangular schedule: ~1x read + 1x write of HBM.
            out = _call_triangular(xf, T, vmem_limit,
                                   _cost(BC, H, W, itemsize, 2))
        else:
            # Edge-masked fallback: 2x read + 1x write, any H.
            out = _call_tiled_fallback(xf, T, vmem_limit,
                                       _cost(BC, H, W, itemsize, 3))
        return out.reshape(B, C, H, W)

    # ---- small-map path: whole (H, W) slices, many per block ---------------
    if W % 128 == 0:
        # Already lane-dense; (TBC, H, W) blocks with no padding waste.
        ps = _padded_block_bytes((H, W), x.dtype)
        tbc = _choose_tbc_3d(BC, ps, min_steps)
        out = _call_batched(xf, tbc, vmem_limit, _cost(BC, H, W, itemsize, 2))
        return out.reshape(B, C, H, W)

    # W not a multiple of 128: lane-dense flat blocks (BC, H*W).
    HW = H * W
    sub = _sublane(x.dtype)
    row_bytes = _roundup(HW, 128) * itemsize
    tbc = _choose_tbc_flat(BC, row_bytes, sub, min_steps)
    if _flat_path_supported(tbc, H, W, x.dtype, vmem_limit):
        out2 = _call_flat(x.reshape(BC, HW), tbc, H, W, vmem_limit,
                          _cost(BC, H, W, itemsize, 2))
        return out2.reshape(B, C, H, W)

    # Fallback: lane-padded whole-slice blocks (correct; slower stores W<128).
    ps = _padded_block_bytes((H, W), x.dtype)
    tbc3 = _choose_tbc_3d(BC, ps, min_steps)
    out = _call_batched(xf, tbc3, vmem_limit, _cost(BC, H, W, itemsize, 2))
    return out.reshape(B, C, H, W)


# ----------------------------------------------------------------------------
# Self-test
# ----------------------------------------------------------------------------
if __name__ == "__main__":
    key = jax.random.PRNGKey(0)
    k1, k2, k3 = jax.random.split(key, 3)

    def ref(t):
        return (t + jnp.transpose(t, (0, 1, 3, 2))) / 2.0

    # 1) Small feature maps (typical module use): lane-dense batched path.
    x1 = jax.random.normal(k1, (2, 4, 16, 16), dtype=jnp.float32)
    y1 = jax.block_until_ready(symm(x1))
    assert y1.shape == x1.shape and y1.dtype == x1.dtype
    assert jnp.allclose(y1, ref(x1), atol=1e-6, rtol=1e-6)
    assert jnp.allclose(y1, jnp.transpose(y1, (0, 1, 3, 2)), atol=1e-6)

    # 2) Triangular tiled path (divisible H), forced 128x128 tiles:
    #    BC=2, 2x2 blocks per slice -> 3 (i<=j) pairs, manual DMA writeback.
    x2 = jax.random.normal(k2, (1, 2, 256, 256), dtype=jnp.float32)
    y2 = jax.block_until_ready(symm(x2, block_hw=128))
    assert y2.shape == x2.shape and y2.dtype == x2.dtype
    assert jnp.allclose(y2, ref(x2), atol=1e-6, rtol=1e-6)
    assert jnp.allclose(y2, jnp.transpose(y2, (0, 1, 3, 2)), atol=1e-6)

    # 3) Non-divisible H on the tiled fallback path (edge-block masking).
    x3 = jax.random.normal(k3, (1, 1, 320, 320), dtype=jnp.float32)
    y3 = jax.block_until_ready(symm(x3, block_hw=128))
    assert y3.shape == x3.shape and y3.dtype == x3.dtype
    assert jnp.allclose(y3, ref(x3), atol=1e-6, rtol=1e-6)
    assert jnp.allclose(y3, jnp.transpose(y3, (0, 1, 3, 2)), atol=1e-6)

    print("KERNEL_OK")
</pallas_src>

<mosaic_0001>
module attributes {stable_mosaic.version = 11 : i64} {
  func.func @_symm_flat_kernel(%arg0: i32, %arg1: memref<8x256xf32, #tpu.memory_space<vmem>>, %arg2: memref<8x256xf32, #tpu.memory_space<vmem>>) attributes {dimension_semantics = [#tpu.dimension_semantics<parallel>], iteration_bounds = array<i64: 1>, scalar_prefetch = 0 : i64, scratch_operands = 0 : i64, tpu.core_type = #tpu.core_type<tc>, window_params = [{transform_indices = @transform_0, window_bounds = array<i64: 8, 256>}, {transform_indices = @transform_1, window_bounds = array<i64: 8, 256>}]} {
    %c0 = arith.constant 0 : index
    %c0_0 = arith.constant 0 : index
    %0 = vector.load %arg1[%c0, %c0_0] : memref<8x256xf32, #tpu.memory_space<vmem>>, vector<8x256xf32>
    %1 = vector.shape_cast %0 : vector<8x256xf32> to vector<8x16x16xf32>
    %2 = tpu.transpose %1, [0, 2, 1] : vector<8x16x16xf32> -> vector<8x16x16xf32>
    %3 = arith.addf %1, %2 : vector<8x16x16xf32>
    %cst = arith.constant 5.000000e-01 : f32
    %4 = vector.broadcast %cst : f32 to vector<8x16x16xf32>
    %5 = arith.mulf %3, %4 : vector<8x16x16xf32>
    %6 = vector.shape_cast %5 : vector<8x16x16xf32> to vector<8x256xf32>
    %c0_1 = arith.constant 0 : index
    %c0_2 = arith.constant 0 : index
    %7 = vector.load %arg2[%c0_1, %c0_2] : memref<8x256xf32, #tpu.memory_space<vmem>>, vector<8x256xf32>
    tpu.vector_store %arg2[%c0_1, %c0_2], %6 {strides = array<i32>} : memref<8x256xf32, #tpu.memory_space<vmem>>, vector<8x256xf32>,
    return
  }
  func.func @transform_0(%arg0: i32) -> (i32, i32) {
    %c0_i32 = arith.constant 0 : i32
    %c0_i32_0 = arith.constant 0 : i32
    return %arg0, %c0_i32 : i32, i32
  }
  func.func @transform_1(%arg0: i32) -> (i32, i32) {
    %c0_i32 = arith.constant 0 : i32
    %c0_i32_0 = arith.constant 0 : i32
    return %arg0, %c0_i32 : i32, i32
  }
}

module attributes {stable_mosaic.version = 11 : i64} {
  func.func @_symm_batched_kernel(%arg0: i32, %arg1: memref<8x16x16xf32, #tpu.memory_space<vmem>>, %arg2: memref<8x16x16xf32, #tpu.memory_space<vmem>>) attributes {dimension_semantics = [#tpu.dimension_semantics<parallel>], iteration_bounds = array<i64: 1>, scalar_prefetch = 0 : i64, scratch_operands = 0 : i64, tpu.core_type = #tpu.core_type<tc>, window_params = [{transform_indices = @transform_0, window_bounds = array<i64: 8, 16, 16>}, {transform_indices = @transform_1, window_bounds = array<i64: 8, 16, 16>}]} {
    %c0 = arith.constant 0 : index
    %c0_0 = arith.constant 0 : index
    %c0_1 = arith.constant 0 : index
    %0 = vector.load %arg1[%c0, %c0_0, %c0_1] : memref<8x16x16xf32, #tpu.memory_space<vmem>>, vector<8x16x16xf32>
    %1 = tpu.transpose %0, [0, 2, 1] : vector<8x16x16xf32> -> vector<8x16x16xf32>
    %2 = arith.addf %0, %1 : vector<8x16x16xf32>
    %cst = arith.constant 5.000000e-01 : f32
    %3 = vector.broadcast %cst : f32 to vector<8x16x16xf32>
    %4 = arith.mulf %2, %3 : vector<8x16x16xf32>
    %c0_2 = arith.constant 0 : index
    %c0_3 = arith.constant 0 : index
    %c0_4 = arith.constant 0 : index
    %5 = vector.load %arg2[%c0_2, %c0_3, %c0_4] : memref<8x16x16xf32, #tpu.memory_space<vmem>>, vector<8x16x16xf32>
    tpu.vector_store %arg2[%c0_2, %c0_3, %c0_4], %4 {strides = array<i32>} : memref<8x16x16xf32, #tpu.memory_space<vmem>>, vector<8x16x16xf32>,
    return
  }
  func.func @transform_0(%arg0: i32) -> (i32, i32, i32) {
    %c0_i32 = arith.constant 0 : i32
    %c0_i32_0 = arith.constant 0 : i32
    %c0_i32_1 = arith.constant 0 : i32
    return %arg0, %c0_i32, %c0_i32_0 : i32, i32, i32
  }
  func.func @transform_1(%arg0: i32) -> (i32, i32, i32) {
    %c0_i32 = arith.constant 0 : i32
    %c0_i32_0 = arith.constant 0 : i32
    %c0_i32_1 = arith.constant 0 : i32
    return %arg0, %c0_i32, %c0_i32_0 : i32, i32, i32
  }
}

</mosaic_0001>

<llo_original>
// kernel: tpu_custom_call.1
$region0: #{tpu_custom_call.1}
  #allocation0 [shape = 'u32[]', space=smem, size = 0x4, offset = 0x4, fixed_abs, tag = 'smem constant byte address 0x4 - core index']
  #allocation1 [shape = 'u32[144,128]{1,0:T(1,128)}', space=vmem, size = 0x12000, scoped, tag = 'internal scratch']
  %s0 = inlined_call_operand.hbm [shape: f32[8,256], index: 0, kind: input, shape index: {}]
  %s1 = inlined_call_operand.hbm [shape: f32[8,256], index: 1, kind: output, shape index: {}]
  %s2 = sld [smem:[#allocation0]]
  $region18: #{tpu_custom_call.1} parent=0
    _
  %s4 = ssub.s32 1, %s2
  %s5 = scalar_select 0, %s4, %s2
  $region1: #{tpu_custom_call.1} parent=0
    #allocation2 [shape = 'u8[8192]{0}', space=vmem, size = 0x2000, scoped, tag = 'input window, operand 0, single buffered']
    #allocation3 [shape = 's32[1]{0}', space=sflag, size = 0x4, scoped, tag = 'scoped memory for tpu_custom_call.1']
    #allocation4 [shape = 's32[1]{0}', space=sflag, size = 0x4, scoped, tag = 'scoped memory for tpu_custom_call.1']
    #allocation5 [shape = 'u8[8192]{0}', space=vmem, size = 0x2000, scoped, tag = 'output window, operand 0, single buffered']
    %6 = vsyncpa [#allocation3], 0
    %7 = vsyncpa [#allocation4], 0
    // Predicated region
    $region2: #{tpu_custom_call.1} parent=1 // pred_check
      _
    $region3: #{tpu_custom_call.1} parent=1 // pred_check_branch
      %9 = sbr.rel (0) target = $region5
    $region4: #{tpu_custom_call.1} parent=1 // pred_region
      %s11 = ssub.s32 256, 256
      %12 = vsyncadd [#allocation3], %s11
      %s14 = sshll.u32 [#allocation2], 4
      %s15 = int_to_ptr.vmem [resolvable:$true] %s14
      %17 = dma.hbm_to_vmem [thread:$0]  %s0, 256, %s15, [#allocation3]
    $region5: #{tpu_custom_call.1} parent=1 // pred_fallthru
      _
    // Predicated region
    $region6: #{tpu_custom_call.1} parent=1 // pred_check
      _
    $region7: #{tpu_custom_call.1} parent=1 // pred_check_branch
      %19 = sbr.rel (0) target = $region9
    $region8: #{tpu_custom_call.1} parent=1 // pred_region
      %20 = dma.done [#allocation3], 256
    $region9: #{tpu_custom_call.1} parent=1 // pred_fallthru
      _
    %v21 = vld [vmem:[#allocation2] sm:$0xff]
    %v22 = vld [vmem:[#allocation2 + $0x8] sm:$0xff]
    %24 = vrot.lane.b32.xlu0 %v21, 112
    %v25 = vpop.permute.xlu0 %24
    %27 = vrot.lane.b32.xlu0 %v21, 96
    %v28 = vpop.permute.xlu0 %27
    %30 = vrot.lane.b32.xlu0 %v21, 80
    %v31 = vpop.permute.xlu0 %30
    %33 = vrot.lane.b32.xlu0 %v21, 64
    %v34 = vpop.permute.xlu0 %33
    %36 = vrot.lane.b32.xlu0 %v21, 48
    %v37 = vpop.permute.xlu0 %36
    %39 = vrot.lane.b32.xlu0 %v21, 32
    %v40 = vpop.permute.xlu0 %39
    %42 = vrot.lane.b32.xlu0 %v21, 16
    %v43 = vpop.permute.xlu0 %42
    %46 = vrot.lane.b32.xlu0 %v22, 112
    %v47 = vpop.permute.xlu0 %46
    %49 = vrot.lane.b32.xlu0 %v22, 96
    %v50 = vpop.permute.xlu0 %49
    %52 = vrot.lane.b32.xlu0 %v22, 80
    %v53 = vpop.permute.xlu0 %52
    %55 = vrot.lane.b32.xlu0 %v22, 64
    %v56 = vpop.permute.xlu0 %55
    %58 = vrot.lane.b32.xlu0 %v22, 48
    %v59 = vpop.permute.xlu0 %58
    %61 = vrot.lane.b32.xlu0 %v22, 32
    %v62 = vpop.permute.xlu0 %61
    %64 = vrot.lane.b32.xlu0 %v22, 16
    %v65 = vpop.permute.xlu0 %64
    %v67 = vcombine.low %v21, %v28
    %v68 = vcombine.high %v21, %v28
    %v70 = vunpack.c.l.s4 1983009808
    %v71 = vunpack.c.0.s8 %v70
    %v72 = vlaneseq
    %v73 = vshrl.u32 %v72, 7
    %v74 = vsub.s32 %v71, %v73
    %v75 = vrot.slane %v67, %v74
    %v77 = vunpack.c.l.s4 1983009808
    %v78 = vunpack.c.0.s8 %v77
    %v79 = vlaneseq
    %v80 = vshrl.u32 %v79, 7
    %v81 = vsub.s32 %v78, %v80
    %v82 = vrot.slane %v68, %v81
    %v83 = vcombine.low %v25, %v31
    %v84 = vcombine.high %v25, %v31
    %v86 = vunpack.c.l.s4 1983009808
    %v87 = vunpack.c.0.s8 %v86
    %v88 = vlaneseq
    %v89 = vshrl.u32 %v88, 7
    %v90 = vsub.s32 %v87, %v89
    %v91 = vrot.slane %v83, %v90
    %v93 = vunpack.c.l.s4 1983009808
    %v94 = vunpack.c.0.s8 %v93
    %v95 = vlaneseq
    %v96 = vshrl.u32 %v95, 7
    %v97 = vsub.s32 %v94, %v96
    %v98 = vrot.slane %v84, %v97
    %v99 = vcombine.low %v34, %v40
    %v100 = vcombine.high %v34, %v40
    %v102 = vunpack.c.l.s4 1983009808
    %v103 = vunpack.c.0.s8 %v102
    %v104 = vlaneseq
    %v105 = vshrl.u32 %v104, 7
    %v106 = vsub.s32 %v103, %v105
    %v107 = vrot.slane %v99, %v106
    %v109 = vunpack.c.l.s4 1983009808
    %v110 = vunpack.c.0.s8 %v109
    %v111 = vlaneseq
    %v112 = vshrl.u32 %v111, 7
    %v113 = vsub.s32 %v110, %v112
    %v114 = vrot.slane %v100, %v113
    %v115 = vcombine.low %v37, %v43
    %v116 = vcombine.high %v37, %v43
    %v118 = vunpack.c.l.s4 1983009808
    %v119 = vunpack.c.0.s8 %v118
    %v120 = vlaneseq
    %v121 = vshrl.u32 %v120, 7
    %v122 = vsub.s32 %v119, %v121
    %v123 = vrot.slane %v115, %v122
    %v125 = vunpack.c.l.s4 1983009808
    %v126 = vunpack.c.0.s8 %v125
    %v127 = vlaneseq
    %v128 = vshrl.u32 %v127, 7
    %v129 = vsub.s32 %v126, %v128
    %v130 = vrot.slane %v116, %v129
    %v131 = vcombine.low %v75, %v91
    %v132 = vcombine.high %v75, %v91
    %v134 = vunpack.c.l.s4 1934713408
    %v135 = vunpack.c.0.s8 %v134
    %v136 = vlaneseq
    %v137 = vshrl.u32 %v136, 7
    %v138 = vsub.s32 %v135, %v137
    %v139 = vrot.slane %v131, %v138
    %v141 = vunpack.c.l.s4 1934713408
    %v142 = vunpack.c.0.s8 %v141
    %v143 = vlaneseq
    %v144 = vshrl.u32 %v143, 7
    %v145 = vsub.s32 %v142, %v144
    %v146 = vrot.slane %v132, %v145
    %v147 = vcombine.low %v82, %v98
    %v148 = vcombine.high %v82, %v98
    %v150 = vunpack.c.l.s4 1934713408
    %v151 = vunpack.c.0.s8 %v150
    %v152 = vlaneseq
    %v153 = vshrl.u32 %v152, 7
    %v154 = vsub.s32 %v151, %v153
    %v155 = vrot.slane %v147, %v154
    %v157 = vunpack.c.l.s4 1934713408
    %v158 = vunpack.c.0.s8 %v157
    %v159 = vlaneseq
    %v160 = vshrl.u32 %v159, 7
    %v161 = vsub.s32 %v158, %v160
    %v162 = vrot.slane %v148, %v161
    %v163 = vcombine.low %v107, %v123
    %v164 = vcombine.high %v107, %v123
    %v166 = vunpack.c.l.s4 1934713408
    %v167 = vunpack.c.0.s8 %v166
    %v168 = vlaneseq
    %v169 = vshrl.u32 %v168, 7
    %v170 = vsub.s32 %v167, %v169
    %v171 = vrot.slane %v163, %v170
    %v173 = vunpack.c.l.s4 1934713408
    %v174 = vunpack.c.0.s8 %v173
    %v175 = vlaneseq
    %v176 = vshrl.u32 %v175, 7
    %v177 = vsub.s32 %v174, %v176
    %v178 = vrot.slane %v164, %v177
    %v179 = vcombine.low %v114, %v130
    %v180 = vcombine.high %v114, %v130
    %v182 = vunpack.c.l.s4 1934713408
    %v183 = vunpack.c.0.s8 %v182
    %v184 = vlaneseq
    %v185 = vshrl.u32 %v184, 7
    %v186 = vsub.s32 %v183, %v185
    %v187 = vrot.slane %v179, %v186
    %v189 = vunpack.c.l.s4 1934713408
    %v190 = vunpack.c.0.s8 %v189
    %v191 = vlaneseq
    %v192 = vshrl.u32 %v191, 7
    %v193 = vsub.s32 %v190, %v192
    %v194 = vrot.slane %v180, %v193
    %v195 = vcombine.low %v139, %v171
    %v196 = vcombine.high %v139, %v171
    %v197 = vcombine.low %v146, %v178
    %v198 = vcombine.high %v146, %v178
    %v199 = vcombine.low %v155, %v187
    %v200 = vcombine.high %v155, %v187
    %v201 = vcombine.low %v162, %v194
    %v202 = vcombine.high %v162, %v194
    %v203 = vcombine.low %v22, %v50
    %v204 = vcombine.high %v22, %v50
    %v206 = vunpack.c.l.s4 1983009808
    %v207 = vunpack.c.0.s8 %v206
    %v208 = vlaneseq
    %v209 = vshrl.u32 %v208, 7
    %v210 = vsub.s32 %v207, %v209
    %v211 = vrot.slane %v203, %v210
    %v213 = vunpack.c.l.s4 1983009808
    %v214 = vunpack.c.0.s8 %v213
    %v215 = vlaneseq
    %v216 = vshrl.u32 %v215, 7
    %v217 = vsub.s32 %v214, %v216
    %v218 = vrot.slane %v204, %v217
    %v219 = vcombine.low %v47, %v53
    %v220 = vcombine.high %v47, %v53
    %v222 = vunpack.c.l.s4 1983009808
    %v223 = vunpack.c.0.s8 %v222
    %v224 = vlaneseq
    %v225 = vshrl.u32 %v224, 7
    %v226 = vsub.s32 %v223, %v225
    %v227 = vrot.slane %v219, %v226
    %v229 = vunpack.c.l.s4 1983009808
    %v230 = vunpack.c.0.s8 %v229
    %v231 = vlaneseq
    %v232 = vshrl.u32 %v231, 7
    %v233 = vsub.s32 %v230, %v232
    %v234 = vrot.slane %v220, %v233
    %v235 = vcombine.low %v56, %v62
    %v236 = vcombine.high %v56, %v62
    %v238 = vunpack.c.l.s4 1983009808
    %v239 = vunpack.c.0.s8 %v238
    %v240 = vlaneseq
    %v241 = vshrl.u32 %v240, 7
    %v242 = vsub.s32 %v239, %v241
    %v243 = vrot.slane %v235, %v242
    %v245 = vunpack.c.l.s4 1983009808
    %v246 = vunpack.c.0.s8 %v245
    %v247 = vlaneseq
    %v248 = vshrl.u32 %v247, 7
    %v249 = vsub.s32 %v246, %v248
    %v250 = vrot.slane %v236, %v249
    %v251 = vcombine.low %v59, %v65
    %v252 = vcombine.high %v59, %v65
    %v254 = vunpack.c.l.s4 1983009808
    %v255 = vunpack.c.0.s8 %v254
    %v256 = vlaneseq
    %v257 = vshrl.u32 %v256, 7
    %v258 = vsub.s32 %v255, %v257
    %v259 = vrot.slane %v251, %v258
    %v261 = vunpack.c.l.s4 1983009808
    %v262 = vunpack.c.0.s8 %v261
    %v263 = vlaneseq
    %v264 = vshrl.u32 %v263, 7
    %v265 = vsub.s32 %v262, %v264
    %v266 = vrot.slane %v252, %v265
    %v267 = vcombine.low %v211, %v227
    %v268 = vcombine.high %v211, %v227
    %v270 = vunpack.c.l.s4 1934713408
    %v271 = vunpack.c.0.s8 %v270
    %v272 = vlaneseq
    %v273 = vshrl.u32 %v272, 7
    %v274 = vsub.s32 %v271, %v273
    %v275 = vrot.slane %v267, %v274
    %v277 = vunpack.c.l.s4 1934713408
    %v278 = vunpack.c.0.s8 %v277
    %v279 = vlaneseq
    %v280 = vshrl.u32 %v279, 7
    %v281 = vsub.s32 %v278, %v280
    %v282 = vrot.slane %v268, %v281
    %v283 = vcombine.low %v218, %v234
    %v284 = vcombine.high %v218, %v234
    %v286 = vunpack.c.l.s4 1934713408
    %v287 = vunpack.c.0.s8 %v286
    %v288 = vlaneseq
    %v289 = vshrl.u32 %v288, 7
    %v290 = vsub.s32 %v287, %v289
    %v291 = vrot.slane %v283, %v290
    %v293 = vunpack.c.l.s4 1934713408
    %v294 = vunpack.c.0.s8 %v293
    %v295 = vlaneseq
    %v296 = vshrl.u32 %v295, 7
    %v297 = vsub.s32 %v294, %v296
    %v298 = vrot.slane %v284, %v297
    %v299 = vcombine.low %v243, %v259
    %v300 = vcombine.high %v243, %v259
    %v302 = vunpack.c.l.s4 1934713408
    %v303 = vunpack.c.0.s8 %v302
    %v304 = vlaneseq
    %v305 = vshrl.u32 %v304, 7
    %v306 = vsub.s32 %v303, %v305
    %v307 = vrot.slane %v299, %v306
    %v309 = vunpack.c.l.s4 1934713408
    %v310 = vunpack.c.0.s8 %v309
    %v311 = vlaneseq
    %v312 = vshrl.u32 %v311, 7
    %v313 = vsub.s32 %v310, %v312
    %v314 = vrot.slane %v300, %v313
    %v315 = vcombine.low %v250, %v266
    %v316 = vcombine.high %v250, %v266
    %v318 = vunpack.c.l.s4 1934713408
    %v319 = vunpack.c.0.s8 %v318
    %v320 = vlaneseq
    %v321 = vshrl.u32 %v320, 7
    %v322 = vsub.s32 %v319, %v321
    %v323 = vrot.slane %v315, %v322
    %v325 = vunpack.c.l.s4 1934713408
    %v326 = vunpack.c.0.s8 %v325
    %v327 = vlaneseq
    %v328 = vshrl.u32 %v327, 7
    %v329 = vsub.s32 %v326, %v328
    %v330 = vrot.slane %v316, %v329
    %v331 = vcombine.low %v275, %v307
    %v332 = vcombine.high %v275, %v307
    %v333 = vcombine.low %v282, %v314
    %v334 = vcombine.high %v282, %v314
    %v335 = vcombine.low %v291, %v323
    %v336 = vcombine.high %v291, %v323
    %v337 = vcombine.low %v298, %v330
    %v338 = vcombine.high %v298, %v330
    %339 = vxpose.xlu0.b32.start [1/16] %v195, 128
    %340 = vxpose.xlu0.b32.cont [2/16] %v331, 128
    %341 = vxpose.xlu0.b32.cont [3/16] 0.0, 128
    %342 = vxpose.xlu0.b32.cont [4/16] 0.0, 128
    %343 = vxpose.xlu0.b32.cont [5/16] 0.0, 128
    %344 = vxpose.xlu0.b32.cont [6/16] 0.0, 128
    %345 = vxpose.xlu0.b32.cont [7/16] 0.0, 128
    %346 = vxpose.xlu0.b32.cont [8/16] 0.0, 128
    %347 = vxpose.xlu0.b32.cont [9/16] 0.0, 128
    %348 = vxpose.xlu0.b32.cont [10/16] 0.0, 128
    %349 = vxpose.xlu0.b32.cont [11/16] 0.0, 128
    %350 = vxpose.xlu0.b32.cont [12/16] 0.0, 128
    %351 = vxpose.xlu0.b32.cont [13/16] 0.0, 128
    %352 = vxpose.xlu0.b32.cont [14/16] 0.0, 128
    %353 = vxpose.xlu0.b32.cont [15/16] 0.0, 128
    %354 = vxpose.xlu0.b32.end [16/16] 0.0, 128
    %v355 = vpop.trf.xlu0
    %v356 = vpop.trf.xlu0
    %v357 = vpop.trf.xlu0
    %v358 = vpop.trf.xlu0
    %v359 = vpop.trf.xlu0
    %v360 = vpop.trf.xlu0
    %v361 = vpop.trf.xlu0
    %v362 = vpop.trf.xlu0
    %v363 = vpop.trf.xlu0
    %v364 = vpop.trf.xlu0
    %v365 = vpop.trf.xlu0
    %v366 = vpop.trf.xlu0
    %v367 = vpop.trf.xlu0
    %v368 = vpop.trf.xlu0
    %v369 = vpop.trf.xlu0
    %v370 = vpop.trf.xlu0
    %371 = vxpose.xlu0.b32.start [1/16] %v196, 128
    %372 = vxpose.xlu0.b32.cont [2/16] %v332, 128
    %373 = vxpose.xlu0.b32.cont [3/16] 0.0, 128
    %374 = vxpose.xlu0.b32.cont [4/16] 0.0, 128
    %375 = vxpose.xlu0.b32.cont [5/16] 0.0, 128
    %376 = vxpose.xlu0.b32.cont [6/16] 0.0, 128
    %377 = vxpose.xlu0.b32.cont [7/16] 0.0, 128
    %378 = vxpose.xlu0.b32.cont [8/16] 0.0, 128
    %379 = vxpose.xlu0.b32.cont [9/16] 0.0, 128
    %380 = vxpose.xlu0.b32.cont [10/16] 0.0, 128
    %381 = vxpose.xlu0.b32.cont [11/16] 0.0, 128
    %382 = vxpose.xlu0.b32.cont [12/16] 0.0, 128
    %383 = vxpose.xlu0.b32.cont [13/16] 0.0, 128
    %384 = vxpose.xlu0.b32.cont [14/16] 0.0, 128
    %385 = vxpose.xlu0.b32.cont [15/16] 0.0, 128
    %386 = vxpose.xlu0.b32.end [16/16] 0.0, 128
    %v387 = vpop.trf.xlu0
    %v388 = vpop.trf.xlu0
    %v389 = vpop.trf.xlu0
    %v390 = vpop.trf.xlu0
    %v391 = vpop.trf.xlu0
    %v392 = vpop.trf.xlu0
    %v393 = vpop.trf.xlu0
    %v394 = vpop.trf.xlu0
    %v395 = vpop.trf.xlu0
    %v396 = vpop.trf.xlu0
    %v397 = vpop.trf.xlu0
    %v398 = vpop.trf.xlu0
    %v399 = vpop.trf.xlu0
    %v400 = vpop.trf.xlu0
    %v401 = vpop.trf.xlu0
    %v402 = vpop.trf.xlu0
    %403 = vxpose.xlu0.b32.start [1/16] %v197, 128
    %404 = vxpose.xlu0.b32.cont [2/16] %v333, 128
    %405 = vxpose.xlu0.b32.cont [3/16] 0.0, 128
    %406 = vxpose.xlu0.b32.cont [4/16] 0.0, 128
    %407 = vxpose.xlu0.b32.cont [5/16] 0.0, 128
    %408 = vxpose.xlu0.b32.cont [6/16] 0.0, 128
    %409 = vxpose.xlu0.b32.cont [7/16] 0.0, 128
    %410 = vxpose.xlu0.b32.cont [8/16] 0.0, 128
    %411 = vxpose.xlu0.b32.cont [9/16] 0.0, 128
    %412 = vxpose.xlu0.b32.cont [10/16] 0.0, 128
    %413 = vxpose.xlu0.b32.cont [11/16] 0.0, 128
    %414 = vxpose.xlu0.b32.cont [12/16] 0.0, 128
    %415 = vxpose.xlu0.b32.cont [13/16] 0.0, 128
    %416 = vxpose.xlu0.b32.cont [14/16] 0.0, 128
    %417 = vxpose.xlu0.b32.cont [15/16] 0.0, 128
    %418 = vxpose.xlu0.b32.end [16/16] 0.0, 128
    %v419 = vpop.trf.xlu0
    %v420 = vpop.trf.xlu0
    %v421 = vpop.trf.xlu0
    %v422 = vpop.trf.xlu0
    %v423 = vpop.trf.xlu0
    %v424 = vpop.trf.xlu0
    %v425 = vpop.trf.xlu0
    %v426 = vpop.trf.xlu0
    %v427 = vpop.trf.xlu0
    %v428 = vpop.trf.xlu0
    %v429 = vpop.trf.xlu0
    %v430 = vpop.trf.xlu0
    %v431 = vpop.trf.xlu0
    %v432 = vpop.trf.xlu0
    %v433 = vpop.trf.xlu0
    %v434 = vpop.trf.xlu0
    %435 = vxpose.xlu0.b32.start [1/16] %v198, 128
    %436 = vxpose.xlu0.b32.cont [2/16] %v334, 128
    %437 = vxpose.xlu0.b32.cont [3/16] 0.0, 128
    %438 = vxpose.xlu0.b32.cont [4/16] 0.0, 128
    %439 = vxpose.xlu0.b32.cont [5/16] 0.0, 128
    %440 = vxpose.xlu0.b32.cont [6/16] 0.0, 128
    %441 = vxpose.xlu0.b32.cont [7/16] 0.0, 128
    %442 = vxpose.xlu0.b32.cont [8/16] 0.0, 128
    %443 = vxpose.xlu0.b32.cont [9/16] 0.0, 128
    %444 = vxpose.xlu0.b32.cont [10/16] 0.0, 128
    %445 = vxpose.xlu0.b32.cont [11/16] 0.0, 128
    %446 = vxpose.xlu0.b32.cont [12/16] 0.0, 128
    %447 = vxpose.xlu0.b32.cont [13/16] 0.0, 128
    %448 = vxpose.xlu0.b32.cont [14/16] 0.0, 128
    %449 = vxpose.xlu0.b32.cont [15/16] 0.0, 128
    %450 = vxpose.xlu0.b32.end [16/16] 0.0, 128
    %v451 = vpop.trf.xlu0
    %v452 = vpop.trf.xlu0
    %v453 = vpop.trf.xlu0
    %v454 = vpop.trf.xlu0
    %v455 = vpop.trf.xlu0
    %v456 = vpop.trf.xlu0
    %v457 = vpop.trf.xlu0
    %v458 = vpop.trf.xlu0
    %v459 = vpop.trf.xlu0
    %v460 = vpop.trf.xlu0
    %v461 = vpop.trf.xlu0
    %v462 = vpop.trf.xlu0
    %v463 = vpop.trf.xlu0
    %v464 = vpop.trf.xlu0
    %v465 = vpop.trf.xlu0
    %v466 = vpop.trf.xlu0
    %467 = vxpose.xlu0.b32.start [1/16] %v199, 128
    %468 = vxpose.xlu0.b32.cont [2/16] %v335, 128
    %469 = vxpose.xlu0.b32.cont [3/16] 0.0, 128
    %470 = vxpose.xlu0.b32.cont [4/16] 0.0, 128
    %471 = vxpose.xlu0.b32.cont [5/16] 0.0, 128
    %472 = vxpose.xlu0.b32.cont [6/16] 0.0, 128
    %473 = vxpose.xlu0.b32.cont [7/16] 0.0, 128
    %474 = vxpose.xlu0.b32.cont [8/16] 0.0, 128
    %475 = vxpose.xlu0.b32.cont [9/16] 0.0, 128
    %476 = vxpose.xlu0.b32.cont [10/16] 0.0, 128
    %477 = vxpose.xlu0.b32.cont [11/16] 0.0, 128
    %478 = vxpose.xlu0.b32.cont [12/16] 0.0, 128
    %479 = vxpose.xlu0.b32.cont [13/16] 0.0, 128
    %480 = vxpose.xlu0.b32.cont [14/16] 0.0, 128
    %481 = vxpose.xlu0.b32.cont [15/16] 0.0, 128
    %482 = vxpose.xlu0.b32.end [16/16] 0.0, 128
    %v483 = vpop.trf.xlu0
    %v484 = vpop.trf.xlu0
    %v485 = vpop.trf.xlu0
    %v486 = vpop.trf.xlu0
    %v487 = vpop.trf.xlu0
    %v488 = vpop.trf.xlu0
    %v489 = vpop.trf.xlu0
    %v490 = vpop.trf.xlu0
    %v491 = vpop.trf.xlu0
    %v492 = vpop.trf.xlu0
    %v493 = vpop.trf.xlu0
    %v494 = vpop.trf.xlu0
    %v495 = vpop.trf.xlu0
    %v496 = vpop.trf.xlu0
    %v497 = vpop.trf.xlu0
    %v498 = vpop.trf.xlu0
    %499 = vxpose.xlu0.b32.start [1/16] %v200, 128
    %500 = vxpose.xlu0.b32.cont [2/16] %v336, 128
    %501 = vxpose.xlu0.b32.cont [3/16] 0.0, 128
    %502 = vxpose.xlu0.b32.cont [4/16] 0.0, 128
    %503 = vxpose.xlu0.b32.cont [5/16] 0.0, 128
    %504 = vxpose.xlu0.b32.cont [6/16] 0.0, 128
    %505 = vxpose.xlu0.b32.cont [7/16] 0.0, 128
    %506 = vxpose.xlu0.b32.cont [8/16] 0.0, 128
    %507 = vxpose.xlu0.b32.cont [9/16] 0.0, 128
    %508 = vxpose.xlu0.b32.cont [10/16] 0.0, 128
    %509 = vxpose.xlu0.b32.cont [11/16] 0.0, 128
    %510 = vxpose.xlu0.b32.cont [12/16] 0.0, 128
    %511 = vxpose.xlu0.b32.cont [13/16] 0.0, 128
    %512 = vxpose.xlu0.b32.cont [14/16] 0.0, 128
    %513 = vxpose.xlu0.b32.cont [15/16] 0.0, 128
    %514 = vxpose.xlu0.b32.end [16/16] 0.0, 128
    %v515 = vpop.trf.xlu0
    %v516 = vpop.trf.xlu0
    %v517 = vpop.trf.xlu0
    %v518 = vpop.trf.xlu0
    %v519 = vpop.trf.xlu0
    %v520 = vpop.trf.xlu0
    %v521 = vpop.trf.xlu0
    %v522 = vpop.trf.xlu0
    %v523 = vpop.trf.xlu0
    %v524 = vpop.trf.xlu0
    %v525 = vpop.trf.xlu0
    %v526 = vpop.trf.xlu0
    %v527 = vpop.trf.xlu0
    %v528 = vpop.trf.xlu0
    %v529 = vpop.trf.xlu0
    %v530 = vpop.trf.xlu0
    %531 = vxpose.xlu0.b32.start [1/16] %v201, 128
    %532 = vxpose.xlu0.b32.cont [2/16] %v337, 128
    %533 = vxpose.xlu0.b32.cont [3/16] 0.0, 128
    %534 = vxpose.xlu0.b32.cont [4/16] 0.0, 128
    %535 = vxpose.xlu0.b32.cont [5/16] 0.0, 128
    %536 = vxpose.xlu0.b32.cont [6/16] 0.0, 128
    %537 = vxpose.xlu0.b32.cont [7/16] 0.0, 128
    %538 = vxpose.xlu0.b32.cont [8/16] 0.0, 128
    %539 = vxpose.xlu0.b32.cont [9/16] 0.0, 128
    %540 = vxpose.xlu0.b32.cont [10/16] 0.0, 128
    %541 = vxpose.xlu0.b32.cont [11/16] 0.0, 128
    %542 = vxpose.xlu0.b32.cont [12/16] 0.0, 128
    %543 = vxpose.xlu0.b32.cont [13/16] 0.0, 128
    %544 = vxpose.xlu0.b32.cont [14/16] 0.0, 128
    %545 = vxpose.xlu0.b32.cont [15/16] 0.0, 128
    %546 = vxpose.xlu0.b32.end [16/16] 0.0, 128
    %v547 = vpop.trf.xlu0
    %v548 = vpop.trf.xlu0
    %v549 = vpop.trf.xlu0
    %v550 = vpop.trf.xlu0
    %v551 = vpop.trf.xlu0
    %v552 = vpop.trf.xlu0
    %v553 = vpop.trf.xlu0
    %v554 = vpop.trf.xlu0
    %v555 = vpop.trf.xlu0
    %v556 = vpop.trf.xlu0
    %v557 = vpop.trf.xlu0
    %v558 = vpop.trf.xlu0
    %v559 = vpop.trf.xlu0
    %v560 = vpop.trf.xlu0
    %v561 = vpop.trf.xlu0
    %v562 = vpop.trf.xlu0
    %563 = vxpose.xlu0.b32.start [1/16] %v202, 128
    %564 = vxpose.xlu0.b32.cont [2/16] %v338, 128
    %565 = vxpose.xlu0.b32.cont [3/16] 0.0, 128
    %566 = vxpose.xlu0.b32.cont [4/16] 0.0, 128
    %567 = vxpose.xlu0.b32.cont [5/16] 0.0, 128
    %568 = vxpose.xlu0.b32.cont [6/16] 0.0, 128
    %569 = vxpose.xlu0.b32.cont [7/16] 0.0, 128
    %570 = vxpose.xlu0.b32.cont [8/16] 0.0, 128
    %571 = vxpose.xlu0.b32.cont [9/16] 0.0, 128
    %572 = vxpose.xlu0.b32.cont [10/16] 0.0, 128
    %573 = vxpose.xlu0.b32.cont [11/16] 0.0, 128
    %574 = vxpose.xlu0.b32.cont [12/16] 0.0, 128
    %575 = vxpose.xlu0.b32.cont [13/16] 0.0, 128
    %576 = vxpose.xlu0.b32.cont [14/16] 0.0, 128
    %577 = vxpose.xlu0.b32.cont [15/16] 0.0, 128
    %578 = vxpose.xlu0.b32.end [16/16] 0.0, 128
    %v579 = vpop.trf.xlu0
    %v580 = vpop.trf.xlu0
    %v581 = vpop.trf.xlu0
    %v582 = vpop.trf.xlu0
    %v583 = vpop.trf.xlu0
    %v584 = vpop.trf.xlu0
    %v585 = vpop.trf.xlu0
    %v586 = vpop.trf.xlu0
    %v587 = vpop.trf.xlu0
    %v588 = vpop.trf.xlu0
    %v589 = vpop.trf.xlu0
    %v590 = vpop.trf.xlu0
    %v591 = vpop.trf.xlu0
    %v592 = vpop.trf.xlu0
    %v593 = vpop.trf.xlu0
    %v594 = vpop.trf.xlu0
    %v595 = vadd.f32 %v195, %v355
    %v596 = vadd.f32 %v331, %v356
    %v597 = vadd.f32 %v196, %v387
    %v598 = vadd.f32 %v332, %v388
    %v599 = vadd.f32 %v197, %v419
    %v600 = vadd.f32 %v333, %v420
    %v601 = vadd.f32 %v198, %v451
    %v602 = vadd.f32 %v334, %v452
    %v603 = vadd.f32 %v199, %v483
    %v604 = vadd.f32 %v335, %v484
    %v605 = vadd.f32 %v200, %v515
    %v606 = vadd.f32 %v336, %v516
    %v607 = vadd.f32 %v201, %v547
    %v608 = vadd.f32 %v337, %v548
    %v609 = vadd.f32 %v202, %v579
    %v610 = vadd.f32 %v338, %v580
    %v611 = vmul.f32 %v595, 0.5
    %v612 = vmul.f32 %v596, 0.5
    %v613 = vmul.f32 %v597, 0.5
    %v614 = vmul.f32 %v598, 0.5
    %v615 = vmul.f32 %v599, 0.5
    %v616 = vmul.f32 %v600, 0.5
    %v617 = vmul.f32 %v601, 0.5
    %v618 = vmul.f32 %v602, 0.5
    %v619 = vmul.f32 %v603, 0.5
    %v620 = vmul.f32 %v604, 0.5
    %v621 = vmul.f32 %v605, 0.5
    %v622 = vmul.f32 %v606, 0.5
    %v623 = vmul.f32 %v607, 0.5
    %v624 = vmul.f32 %v608, 0.5
    %v625 = vmul.f32 %v609, 0.5
    %v626 = vmul.f32 %v610, 0.5
    %v627 = vcombine.low %v611, %v615
    %v628 = vcombine.high %v611, %v615
    %v630 = vunpack.c.l.s4 1983009808
    %v631 = vunpack.c.0.s8 %v630
    %v632 = vlaneseq
    %v633 = vshrl.u32 %v632, 7
    %v634 = vsub.s32 %v631, %v633
    %v635 = vrot.slane %v627, %v634
    %v637 = vunpack.c.l.s4 1983009808
    %v638 = vunpack.c.0.s8 %v637
    %v639 = vlaneseq
    %v640 = vshrl.u32 %v639, 7
    %v641 = vsub.s32 %v638, %v640
    %v642 = vrot.slane %v628, %v641
    %v643 = vcombine.low %v613, %v617
    %v644 = vcombine.high %v613, %v617
    %v646 = vunpack.c.l.s4 1983009808
    %v647 = vunpack.c.0.s8 %v646
    %v648 = vlaneseq
    %v649 = vshrl.u32 %v648, 7
    %v650 = vsub.s32 %v647, %v649
    %v651 = vrot.slane %v643, %v650
    %v653 = vunpack.c.l.s4 1983009808
    %v654 = vunpack.c.0.s8 %v653
    %v655 = vlaneseq
    %v656 = vshrl.u32 %v655, 7
    %v657 = vsub.s32 %v654, %v656
    %v658 = vrot.slane %v644, %v657
    %v659 = vcombine.low %v619, %v623
    %v660 = vcombine.high %v619, %v623
    %v662 = vunpack.c.l.s4 1983009808
    %v663 = vunpack.c.0.s8 %v662
    %v664 = vlaneseq
    %v665 = vshrl.u32 %v664, 7
    %v666 = vsub.s32 %v663, %v665
    %v667 = vrot.slane %v659, %v666
    %v669 = vunpack.c.l.s4 1983009808
    %v670 = vunpack.c.0.s8 %v669
    %v671 = vlaneseq
    %v672 = vshrl.u32 %v671, 7
    %v673 = vsub.s32 %v670, %v672
    %v674 = vrot.slane %v660, %v673
    %v675 = vcombine.low %v621, %v625
    %v676 = vcombine.high %v621, %v625
    %v678 = vunpack.c.l.s4 1983009808
    %v679 = vunpack.c.0.s8 %v678
    %v680 = vlaneseq
    %v681 = vshrl.u32 %v680, 7
    %v682 = vsub.s32 %v679, %v681
    %v683 = vrot.slane %v675, %v682
    %v685 = vunpack.c.l.s4 1983009808
    %v686 = vunpack.c.0.s8 %v685
    %v687 = vlaneseq
    %v688 = vshrl.u32 %v687, 7
    %v689 = vsub.s32 %v686, %v688
    %v690 = vrot.slane %v676, %v689
    %v691 = vcombine.low %v635, %v651
    %v692 = vcombine.high %v635, %v651
    %v694 = vunpack.c.l.s4 1934713408
    %v695 = vunpack.c.0.s8 %v694
    %v696 = vlaneseq
    %v697 = vshrl.u32 %v696, 7
    %v698 = vsub.s32 %v695, %v697
    %v699 = vrot.slane %v691, %v698
    %v701 = vunpack.c.l.s4 1934713408
    %v702 = vunpack.c.0.s8 %v701
    %v703 = vlaneseq
    %v704 = vshrl.u32 %v703, 7
    %v705 = vsub.s32 %v702, %v704
    %v706 = vrot.slane %v692, %v705
    %v707 = vcombine.low %v642, %v658
    %v708 = vcombine.high %v642, %v658
    %v710 = vunpack.c.l.s4 1934713408
    %v711 = vunpack.c.0.s8 %v710
    %v712 = vlaneseq
    %v713 = vshrl.u32 %v712, 7
    %v714 = vsub.s32 %v711, %v713
    %v715 = vrot.slane %v707, %v714
    %v717 = vunpack.c.l.s4 1934713408
    %v718 = vunpack.c.0.s8 %v717
    %v719 = vlaneseq
    %v720 = vshrl.u32 %v719, 7
    %v721 = vsub.s32 %v718, %v720
    %v722 = vrot.slane %v708, %v721
    %v723 = vcombine.low %v667, %v683
    %v724 = vcombine.high %v667, %v683
    %v726 = vunpack.c.l.s4 1934713408
    %v727 = vunpack.c.0.s8 %v726
    %v728 = vlaneseq
    %v729 = vshrl.u32 %v728, 7
    %v730 = vsub.s32 %v727, %v729
    %v731 = vrot.slane %v723, %v730
    %v733 = vunpack.c.l.s4 1934713408
    %v734 = vunpack.c.0.s8 %v733
    %v735 = vlaneseq
    %v736 = vshrl.u32 %v735, 7
    %v737 = vsub.s32 %v734, %v736
    %v738 = vrot.slane %v724, %v737
    %v739 = vcombine.low %v674, %v690
    %v740 = vcombine.high %v674, %v690
    %v742 = vunpack.c.l.s4 1934713408
    %v743 = vunpack.c.0.s8 %v742
    %v744 = vlaneseq
    %v745 = vshrl.u32 %v744, 7
    %v746 = vsub.s32 %v743, %v745
    %v747 = vrot.slane %v739, %v746
    %v749 = vunpack.c.l.s4 1934713408
    %v750 = vunpack.c.0.s8 %v749
    %v751 = vlaneseq
    %v752 = vshrl.u32 %v751, 7
    %v753 = vsub.s32 %v750, %v752
    %v754 = vrot.slane %v740, %v753
    %v755 = vcombine.low %v699, %v731
    %v756 = vcombine.high %v699, %v731
    %v757 = vcombine.low %v706, %v738
    %v758 = vcombine.high %v706, %v738
    %v759 = vcombine.low %v715, %v747
    %v760 = vcombine.high %v715, %v747
    %v761 = vcombine.low %v722, %v754
    %v762 = vcombine.high %v722, %v754
    %v763 = vcombine.low %v612, %v616
    %v764 = vcombine.high %v612, %v616
    %v766 = vunpack.c.l.s4 1983009808
    %v767 = vunpack.c.0.s8 %v766
    %v768 = vlaneseq
    %v769 = vshrl.u32 %v768, 7
    %v770 = vsub.s32 %v767, %v769
    %v771 = vrot.slane %v763, %v770
    %v773 = vunpack.c.l.s4 1983009808
    %v774 = vunpack.c.0.s8 %v773
    %v775 = vlaneseq
    %v776 = vshrl.u32 %v775, 7
    %v777 = vsub.s32 %v774, %v776
    %v778 = vrot.slane %v764, %v777
    %v779 = vcombine.low %v614, %v618
    %v780 = vcombine.high %v614, %v618
    %v782 = vunpack.c.l.s4 1983009808
    %v783 = vunpack.c.0.s8 %v782
    %v784 = vlaneseq
    %v785 = vshrl.u32 %v784, 7
    %v786 = vsub.s32 %v783, %v785
    %v787 = vrot.slane %v779, %v786
    %v789 = vunpack.c.l.s4 1983009808
    %v790 = vunpack.c.0.s8 %v789
    %v791 = vlaneseq
    %v792 = vshrl.u32 %v791, 7
    %v793 = vsub.s32 %v790, %v792
    %v794 = vrot.slane %v780, %v793
    %v795 = vcombine.low %v620, %v624
    %v796 = vcombine.high %v620, %v624
    %v798 = vunpack.c.l.s4 1983009808
    %v799 = vunpack.c.0.s8 %v798
    %v800 = vlaneseq
    %v801 = vshrl.u32 %v800, 7
    %v802 = vsub.s32 %v799, %v801
    %v803 = vrot.slane %v795, %v802
    %v805 = vunpack.c.l.s4 1983009808
    %v806 = vunpack.c.0.s8 %v805
    %v807 = vlaneseq
    %v808 = vshrl.u32 %v807, 7
    %v809 = vsub.s32 %v806, %v808
    %v810 = vrot.slane %v796, %v809
    %v811 = vcombine.low %v622, %v626
    %v812 = vcombine.high %v622, %v626
    %v814 = vunpack.c.l.s4 1983009808
    %v815 = vunpack.c.0.s8 %v814
    %v816 = vlaneseq
    %v817 = vshrl.u32 %v816, 7
    %v818 = vsub.s32 %v815, %v817
    %v819 = vrot.slane %v811, %v818
    %v821 = vunpack.c.l.s4 1983009808
    %v822 = vunpack.c.0.s8 %v821
    %v823 = vlaneseq
    %v824 = vshrl.u32 %v823, 7
    %v825 = vsub.s32 %v822, %v824
    %v826 = vrot.slane %v812, %v825
    %v827 = vcombine.low %v771, %v787
    %v828 = vcombine.high %v771, %v787
    %v830 = vunpack.c.l.s4 1934713408
    %v831 = vunpack.c.0.s8 %v830
    %v832 = vlaneseq
    %v833 = vshrl.u32 %v832, 7
    %v834 = vsub.s32 %v831, %v833
    %v835 = vrot.slane %v827, %v834
    %v837 = vunpack.c.l.s4 1934713408
    %v838 = vunpack.c.0.s8 %v837
    %v839 = vlaneseq
    %v840 = vshrl.u32 %v839, 7
    %v841 = vsub.s32 %v838, %v840
    %v842 = vrot.slane %v828, %v841
    %v843 = vcombine.low %v778, %v794
    %v844 = vcombine.high %v778, %v794
    %v846 = vunpack.c.l.s4 1934713408
    %v847 = vunpack.c.0.s8 %v846
    %v848 = vlaneseq
    %v849 = vshrl.u32 %v848, 7
    %v850 = vsub.s32 %v847, %v849
    %v851 = vrot.slane %v843, %v850
    %v853 = vunpack.c.l.s4 1934713408
    %v854 = vunpack.c.0.s8 %v853
    %v855 = vlaneseq
    %v856 = vshrl.u32 %v855, 7
    %v857 = vsub.s32 %v854, %v856
    %v858 = vrot.slane %v844, %v857
    %v859 = vcombine.low %v803, %v819
    %v860 = vcombine.high %v803, %v819
    %v862 = vunpack.c.l.s4 1934713408
    %v863 = vunpack.c.0.s8 %v862
    %v864 = vlaneseq
    %v865 = vshrl.u32 %v864, 7
    %v866 = vsub.s32 %v863, %v865
    %v867 = vrot.slane %v859, %v866
    %v869 = vunpack.c.l.s4 1934713408
    %v870 = vunpack.c.0.s8 %v869
    %v871 = vlaneseq
    %v872 = vshrl.u32 %v871, 7
    %v873 = vsub.s32 %v870, %v872
    %v874 = vrot.slane %v860, %v873
    %v875 = vcombine.low %v810, %v826
    %v876 = vcombine.high %v810, %v826
    %v878 = vunpack.c.l.s4 1934713408
    %v879 = vunpack.c.0.s8 %v878
    %v880 = vlaneseq
    %v881 = vshrl.u32 %v880, 7
    %v882 = vsub.s32 %v879, %v881
    %v883 = vrot.slane %v875, %v882
    %v885 = vunpack.c.l.s4 1934713408
    %v886 = vunpack.c.0.s8 %v885
    %v887 = vlaneseq
    %v888 = vshrl.u32 %v887, 7
    %v889 = vsub.s32 %v886, %v888
    %v890 = vrot.slane %v876, %v889
    %v891 = vcombine.low %v835, %v867
    %v892 = vcombine.high %v835, %v867
    %v893 = vcombine.low %v842, %v874
    %v894 = vcombine.high %v842, %v874
    %v895 = vcombine.low %v851, %v883
    %v896 = vcombine.high %v851, %v883
    %v897 = vcombine.low %v858, %v890
    %v898 = vcombine.high %v858, %v890
    %900 = vrot.lane.b32.xlu0 %v756, 16
    %v901 = vpop.permute.xlu0 %900
    %904 = vrot.lane.b32.xlu0 %v757, 32
    %v905 = vpop.permute.xlu0 %904
    %908 = vrot.lane.b32.xlu0 %v758, 48
    %v909 = vpop.permute.xlu0 %908
    %912 = vrot.lane.b32.xlu0 %v759, 64
    %v913 = vpop.permute.xlu0 %912
    %916 = vrot.lane.b32.xlu0 %v760, 80
    %v917 = vpop.permute.xlu0 %916
    %920 = vrot.lane.b32.xlu0 %v761, 96
    %v921 = vpop.permute.xlu0 %920
    %924 = vrot.lane.b32.xlu0 %v762, 112
    %v925 = vpop.permute.xlu0 %924
    %928 = vrot.lane.b32.xlu0 %v892, 16
    %v929 = vpop.permute.xlu0 %928
    %932 = vrot.lane.b32.xlu0 %v893, 32
    %v933 = vpop.permute.xlu0 %932
    %936 = vrot.lane.b32.xlu0 %v894, 48
    %v937 = vpop.permute.xlu0 %936
    %940 = vrot.lane.b32.xlu0 %v895, 64
    %v941 = vpop.permute.xlu0 %940
    %944 = vrot.lane.b32.xlu0 %v896, 80
    %v945 = vpop.permute.xlu0 %944
    %948 = vrot.lane.b32.xlu0 %v897, 96
    %v949 = vpop.permute.xlu0 %948
    %952 = vrot.lane.b32.xlu0 %v898, 112
    %v953 = vpop.permute.xlu0 %952
    %vm955 = vcmask 130048
    %v956 = vsel %vm955, %v755, %v901
    %vm957 = vcmask 261120
    %v958 = vsel %vm957, %v956, %v905
    %vm959 = vcmask 392192
    %v960 = vsel %vm959, %v958, %v909
    %vm961 = vcmask 523264
    %v962 = vsel %vm961, %v960, %v913
    %vm963 = vcmask 654336
    %v964 = vsel %vm963, %v962, %v917
    %vm965 = vcmask 785408
    %v966 = vsel %vm965, %v964, %v921
    %vm967 = vcmask 916480
    %v968 = vsel %vm967, %v966, %v925
    %v969 = vsel %vm955, %v891, %v929
    %v970 = vsel %vm957, %v969, %v933
    %v971 = vsel %vm959, %v970, %v937
    %v972 = vsel %vm961, %v971, %v941
    %v973 = vsel %vm963, %v972, %v945
    %v974 = vsel %vm965, %v973, %v949
    %v975 = vsel %vm967, %v974, %v953
    %976 = vst [vmem:[#allocation5] sm:$0xff] %v968
    %977 = vst [vmem:[#allocation5 + $0x8] sm:$0xff] %v975
    // Predicated region
    $region10: #{tpu_custom_call.1} parent=1 // pred_check
      _
    $region11: #{tpu_custom_call.1} parent=1 // pred_check_branch
      %979 = sbr.rel (0) target = $region13
    $region12: #{tpu_custom_call.1} parent=1 // pred_region
      %s981 = ssub.s32 256, 256
      %982 = vsyncadd [#allocation4], %s981
      %s984 = sshll.u32 [#allocation5], 4
      %s985 = int_to_ptr.vmem [resolvable:$true] %s984
      %987 = dma.vmem_to_hbm [thread:$0]  %s985, 256, %s1, [#allocation4]
    $region13: #{tpu_custom_call.1} parent=1 // pred_fallthru
      _
    // Predicated region
    $region14: #{tpu_custom_call.1} parent=1 // pred_check
      _
    $region15: #{tpu_custom_call.1} parent=1 // pred_check_branch
      %989 = sbr.rel (0) target = $region17
    $region16: #{tpu_custom_call.1} parent=1 // pred_region
      %990 = dma.done [#allocation4], 256
    $region17: #{tpu_custom_call.1} parent=1 // pred_fallthru
      _
    %991 = vsyncpa [#allocation3], 1
    %992 = vsyncpa [#allocation4], 1

// kernel: tpu_custom_call.1
$region0: #{tpu_custom_call.1}
  #allocation0 [shape = 'u32[]', space=smem, size = 0x4, offset = 0x4, fixed_abs, tag = 'smem constant byte address 0x4 - core index']
  #allocation1 [shape = 'u32[144,128]{1,0:T(1,128)}', space=vmem, size = 0x12000, scoped, tag = 'internal scratch']
  %s0 = inlined_call_operand.hbm [shape: f32[8,16,16], index: 0, kind: input, shape index: {}]
  %s1 = inlined_call_operand.hbm [shape: f32[8,16,16], index: 1, kind: output, shape index: {}]
  %s2 = sld [smem:[#allocation0]]
  $region18: #{tpu_custom_call.1} parent=0
    _
  %s4 = ssub.s32 1, %s2
  %s5 = scalar_select 0, %s4, %s2
  $region1: #{tpu_custom_call.1} parent=0
    #allocation2 [shape = 'u8[65536]{0}', space=vmem, size = 0x10000, scoped, tag = 'input window, operand 0, single buffered']
    #allocation3 [shape = 's32[1]{0}', space=sflag, size = 0x4, scoped, tag = 'scoped memory for tpu_custom_call.1']
    #allocation4 [shape = 's32[1]{0}', space=sflag, size = 0x4, scoped, tag = 'scoped memory for tpu_custom_call.1']
    #allocation5 [shape = 'u8[65536]{0}', space=vmem, size = 0x10000, scoped, tag = 'output window, operand 0, single buffered']
    %6 = vsyncpa [#allocation3], 0
    %7 = vsyncpa [#allocation4], 0
    // Predicated region
    $region2: #{tpu_custom_call.1} parent=1 // pred_check
      _
    $region3: #{tpu_custom_call.1} parent=1 // pred_check_branch
      %9 = sbr.rel (0) target = $region5
    $region4: #{tpu_custom_call.1} parent=1 // pred_region
      %s11 = ssub.s32 2048, 2048
      %12 = vsyncadd [#allocation3], %s11
      %s13 = sshll.u32 [#allocation2], 4
      %s14 = int_to_ptr.vmem [resolvable:$true] %s13
      %19 = dma.hbm_to_vmem [thread:$0]  %s0, 2048, %s14, [#allocation3], 128, 128, 8
    $region5: #{tpu_custom_call.1} parent=1 // pred_fallthru
      _
    // Predicated region
    $region6: #{tpu_custom_call.1} parent=1 // pred_check
      _
    $region7: #{tpu_custom_call.1} parent=1 // pred_check_branch
      %21 = sbr.rel (0) target = $region9
    $region8: #{tpu_custom_call.1} parent=1 // pred_region
      %22 = dma.done [#allocation3], 2048
    $region9: #{tpu_custom_call.1} parent=1 // pred_fallthru
      _
    %v23 = vld [vmem:[#allocation2] sm:$0xff]
    %v24 = vld [vmem:[#allocation2 + $0x8] sm:$0xff]
    %v25 = vld [vmem:[#allocation2 + $0x10] sm:$0xff]
    %v26 = vld [vmem:[#allocation2 + $0x18] sm:$0xff]
    %v27 = vld [vmem:[#allocation2 + $0x20] sm:$0xff]
    %v28 = vld [vmem:[#allocation2 + $0x28] sm:$0xff]
    %v29 = vld [vmem:[#allocation2 + $0x30] sm:$0xff]
    %v30 = vld [vmem:[#allocation2 + $0x38] sm:$0xff]
    %v31 = vld [vmem:[#allocation2 + $0x40] sm:$0xff]
    %v32 = vld [vmem:[#allocation2 + $0x48] sm:$0xff]
    %v33 = vld [vmem:[#allocation2 + $0x50] sm:$0xff]
    %v34 = vld [vmem:[#allocation2 + $0x58] sm:$0xff]
    %v35 = vld [vmem:[#allocation2 + $0x60] sm:$0xff]
    %v36 = vld [vmem:[#allocation2 + $0x68] sm:$0xff]
    %v37 = vld [vmem:[#allocation2 + $0x70] sm:$0xff]
    %v38 = vld [vmem:[#allocation2 + $0x78] sm:$0xff]
    %39 = vxpose.xlu0.b32.start [1/16] %v23, 128
    %40 = vxpose.xlu0.b32.cont [2/16] %v24, 128
    %41 = vxpose.xlu0.b32.cont [3/16] 0.0, 128
    %42 = vxpose.xlu0.b32.cont [4/16] 0.0, 128
    %43 = vxpose.xlu0.b32.cont [5/16] 0.0, 128
    %44 = vxpose.xlu0.b32.cont [6/16] 0.0, 128
    %45 = vxpose.xlu0.b32.cont [7/16] 0.0, 128
    %46 = vxpose.xlu0.b32.cont [8/16] 0.0, 128
    %47 = vxpose.xlu0.b32.cont [9/16] 0.0, 128
    %48 = vxpose.xlu0.b32.cont [10/16] 0.0, 128
    %49 = vxpose.xlu0.b32.cont [11/16] 0.0, 128
    %50 = vxpose.xlu0.b32.cont [12/16] 0.0, 128
    %51 = vxpose.xlu0.b32.cont [13/16] 0.0, 128
    %52 = vxpose.xlu0.b32.cont [14/16] 0.0, 128
    %53 = vxpose.xlu0.b32.cont [15/16] 0.0, 128
    %54 = vxpose.xlu0.b32.end [16/16] 0.0, 128
    %v55 = vpop.trf.xlu0
    %v56 = vpop.trf.xlu0
    %v57 = vpop.trf.xlu0
    %v58 = vpop.trf.xlu0
    %v59 = vpop.trf.xlu0
    %v60 = vpop.trf.xlu0
    %v61 = vpop.trf.xlu0
    %v62 = vpop.trf.xlu0
    %v63 = vpop.trf.xlu0
    %v64 = vpop.trf.xlu0
    %v65 = vpop.trf.xlu0
    %v66 = vpop.trf.xlu0
    %v67 = vpop.trf.xlu0
    %v68 = vpop.trf.xlu0
    %v69 = vpop.trf.xlu0
    %v70 = vpop.trf.xlu0
    %71 = vxpose.xlu0.b32.start [1/16] %v25, 128
    %72 = vxpose.xlu0.b32.cont [2/16] %v26, 128
    %73 = vxpose.xlu0.b32.cont [3/16] 0.0, 128
    %74 = vxpose.xlu0.b32.cont [4/16] 0.0, 128
    %75 = vxpose.xlu0.b32.cont [5/16] 0.0, 128
    %76 = vxpose.xlu0.b32.cont [6/16] 0.0, 128
    %77 = vxpose.xlu0.b32.cont [7/16] 0.0, 128
    %78 = vxpose.xlu0.b32.cont [8/16] 0.0, 128
    %79 = vxpose.xlu0.b32.cont [9/16] 0.0, 128
    %80 = vxpose.xlu0.b32.cont [10/16] 0.0, 128
    %81 = vxpose.xlu0.b32.cont [11/16] 0.0, 128
    %82 = vxpose.xlu0.b32.cont [12/16] 0.0, 128
    %83 = vxpose.xlu0.b32.cont [13/16] 0.0, 128
    %84 = vxpose.xlu0.b32.cont [14/16] 0.0, 128
    %85 = vxpose.xlu0.b32.cont [15/16] 0.0, 128
    %86 = vxpose.xlu0.b32.end [16/16] 0.0, 128
    %v87 = vpop.trf.xlu0
    %v88 = vpop.trf.xlu0
    %v89 = vpop.trf.xlu0
    %v90 = vpop.trf.xlu0
    %v91 = vpop.trf.xlu0
    %v92 = vpop.trf.xlu0
    %v93 = vpop.trf.xlu0
    %v94 = vpop.trf.xlu0
    %v95 = vpop.trf.xlu0
    %v96 = vpop.trf.xlu0
    %v97 = vpop.trf.xlu0
    %v98 = vpop.trf.xlu0
    %v99 = vpop.trf.xlu0
    %v100 = vpop.trf.xlu0
    %v101 = vpop.trf.xlu0
    %v102 = vpop.trf.xlu0
    %103 = vxpose.xlu0.b32.start [1/16] %v27, 128
    %104 = vxpose.xlu0.b32.cont [2/16] %v28, 128
    %105 = vxpose.xlu0.b32.cont [3/16] 0.0, 128
    %106 = vxpose.xlu0.b32.cont [4/16] 0.0, 128
    %107 = vxpose.xlu0.b32.cont [5/16] 0.0, 128
    %108 = vxpose.xlu0.b32.cont [6/16] 0.0, 128
    %109 = vxpose.xlu0.b32.cont [7/16] 0.0, 128
    %110 = vxpose.xlu0.b32.cont [8/16] 0.0, 128
    %111 = vxpose.xlu0.b32.cont [9/16] 0.0, 128
    %112 = vxpose.xlu0.b32.cont [10/16] 0.0, 128
    %113 = vxpose.xlu0.b32.cont [11/16] 0.0, 128
    %114 = vxpose.xlu0.b32.cont [12/16] 0.0, 128
    %115 = vxpose.xlu0.b32.cont [13/16] 0.0, 128
    %116 = vxpose.xlu0.b32.cont [14/16] 0.0, 128
    %117 = vxpose.xlu0.b32.cont [15/16] 0.0, 128
    %118 = vxpose.xlu0.b32.end [16/16] 0.0, 128
    %v119 = vpop.trf.xlu0
    %v120 = vpop.trf.xlu0
    %v121 = vpop.trf.xlu0
    %v122 = vpop.trf.xlu0
    %v123 = vpop.trf.xlu0
    %v124 = vpop.trf.xlu0
    %v125 = vpop.trf.xlu0
    %v126 = vpop.trf.xlu0
    %v127 = vpop.trf.xlu0
    %v128 = vpop.trf.xlu0
    %v129 = vpop.trf.xlu0
    %v130 = vpop.trf.xlu0
    %v131 = vpop.trf.xlu0
    %v132 = vpop.trf.xlu0
    %v133 = vpop.trf.xlu0
    %v134 = vpop.trf.xlu0
    %135 = vxpose.xlu0.b32.start [1/16] %v29, 128
    %136 = vxpose.xlu0.b32.cont [2/16] %v30, 128
    %137 = vxpose.xlu0.b32.cont [3/16] 0.0, 128
    %138 = vxpose.xlu0.b32.cont [4/16] 0.0, 128
    %139 = vxpose.xlu0.b32.cont [5/16] 0.0, 128
    %140 = vxpose.xlu0.b32.cont [6/16] 0.0, 128
    %141 = vxpose.xlu0.b32.cont [7/16] 0.0, 128
    %142 = vxpose.xlu0.b32.cont [8/16] 0.0, 128
    %143 = vxpose.xlu0.b32.cont [9/16] 0.0, 128
    %144 = vxpose.xlu0.b32.cont [10/16] 0.0, 128
    %145 = vxpose.xlu0.b32.cont [11/16] 0.0, 128
    %146 = vxpose.xlu0.b32.cont [12/16] 0.0, 128
    %147 = vxpose.xlu0.b32.cont [13/16] 0.0, 128
    %148 = vxpose.xlu0.b32.cont [14/16] 0.0, 128
    %149 = vxpose.xlu0.b32.cont [15/16] 0.0, 128
    %150 = vxpose.xlu0.b32.end [16/16] 0.0, 128
    %v151 = vpop.trf.xlu0
    %v152 = vpop.trf.xlu0
    %v153 = vpop.trf.xlu0
    %v154 = vpop.trf.xlu0
    %v155 = vpop.trf.xlu0
    %v156 = vpop.trf.xlu0
    %v157 = vpop.trf.xlu0
    %v158 = vpop.trf.xlu0
    %v159 = vpop.trf.xlu0
    %v160 = vpop.trf.xlu0
    %v161 = vpop.trf.xlu0
    %v162 = vpop.trf.xlu0
    %v163 = vpop.trf.xlu0
    %v164 = vpop.trf.xlu0
    %v165 = vpop.trf.xlu0
    %v166 = vpop.trf.xlu0
    %167 = vxpose.xlu0.b32.start [1/16] %v31, 128
    %168 = vxpose.xlu0.b32.cont [2/16] %v32, 128
    %169 = vxpose.xlu0.b32.cont [3/16] 0.0, 128
    %170 = vxpose.xlu0.b32.cont [4/16] 0.0, 128
    %171 = vxpose.xlu0.b32.cont [5/16] 0.0, 128
    %172 = vxpose.xlu0.b32.cont [6/16] 0.0, 128
    %173 = vxpose.xlu0.b32.cont [7/16] 0.0, 128
    %174 = vxpose.xlu0.b32.cont [8/16] 0.0, 128
    %175 = vxpose.xlu0.b32.cont [9/16] 0.0, 128
    %176 = vxpose.xlu0.b32.cont [10/16] 0.0, 128
    %177 = vxpose.xlu0.b32.cont [11/16] 0.0, 128
    %178 = vxpose.xlu0.b32.cont [12/16] 0.0, 128
    %179 = vxpose.xlu0.b32.cont [13/16] 0.0, 128
    %180 = vxpose.xlu0.b32.cont [14/16] 0.0, 128
    %181 = vxpose.xlu0.b32.cont [15/16] 0.0, 128
    %182 = vxpose.xlu0.b32.end [16/16] 0.0, 128
    %v183 = vpop.trf.xlu0
    %v184 = vpop.trf.xlu0
    %v185 = vpop.trf.xlu0
    %v186 = vpop.trf.xlu0
    %v187 = vpop.trf.xlu0
    %v188 = vpop.trf.xlu0
    %v189 = vpop.trf.xlu0
    %v190 = vpop.trf.xlu0
    %v191 = vpop.trf.xlu0
    %v192 = vpop.trf.xlu0
    %v193 = vpop.trf.xlu0
    %v194 = vpop.trf.xlu0
    %v195 = vpop.trf.xlu0
    %v196 = vpop.trf.xlu0
    %v197 = vpop.trf.xlu0
    %v198 = vpop.trf.xlu0
    %199 = vxpose.xlu0.b32.start [1/16] %v33, 128
    %200 = vxpose.xlu0.b32.cont [2/16] %v34, 128
    %201 = vxpose.xlu0.b32.cont [3/16] 0.0, 128
    %202 = vxpose.xlu0.b32.cont [4/16] 0.0, 128
    %203 = vxpose.xlu0.b32.cont [5/16] 0.0, 128
    %204 = vxpose.xlu0.b32.cont [6/16] 0.0, 128
    %205 = vxpose.xlu0.b32.cont [7/16] 0.0, 128
    %206 = vxpose.xlu0.b32.cont [8/16] 0.0, 128
    %207 = vxpose.xlu0.b32.cont [9/16] 0.0, 128
    %208 = vxpose.xlu0.b32.cont [10/16] 0.0, 128
    %209 = vxpose.xlu0.b32.cont [11/16] 0.0, 128
    %210 = vxpose.xlu0.b32.cont [12/16] 0.0, 128
    %211 = vxpose.xlu0.b32.cont [13/16] 0.0, 128
    %212 = vxpose.xlu0.b32.cont [14/16] 0.0, 128
    %213 = vxpose.xlu0.b32.cont [15/16] 0.0, 128
    %214 = vxpose.xlu0.b32.end [16/16] 0.0, 128
    %v215 = vpop.trf.xlu0
    %v216 = vpop.trf.xlu0
    %v217 = vpop.trf.xlu0
    %v218 = vpop.trf.xlu0
    %v219 = vpop.trf.xlu0
    %v220 = vpop.trf.xlu0
    %v221 = vpop.trf.xlu0
    %v222 = vpop.trf.xlu0
    %v223 = vpop.trf.xlu0
    %v224 = vpop.trf.xlu0
    %v225 = vpop.trf.xlu0
    %v226 = vpop.trf.xlu0
    %v227 = vpop.trf.xlu0
    %v228 = vpop.trf.xlu0
    %v229 = vpop.trf.xlu0
    %v230 = vpop.trf.xlu0
    %231 = vxpose.xlu0.b32.start [1/16] %v35, 128
    %232 = vxpose.xlu0.b32.cont [2/16] %v36, 128
    %233 = vxpose.xlu0.b32.cont [3/16] 0.0, 128
    %234 = vxpose.xlu0.b32.cont [4/16] 0.0, 128
    %235 = vxpose.xlu0.b32.cont [5/16] 0.0, 128
    %236 = vxpose.xlu0.b32.cont [6/16] 0.0, 128
    %237 = vxpose.xlu0.b32.cont [7/16] 0.0, 128
    %238 = vxpose.xlu0.b32.cont [8/16] 0.0, 128
    %239 = vxpose.xlu0.b32.cont [9/16] 0.0, 128
    %240 = vxpose.xlu0.b32.cont [10/16] 0.0, 128
    %241 = vxpose.xlu0.b32.cont [11/16] 0.0, 128
    %242 = vxpose.xlu0.b32.cont [12/16] 0.0, 128
    %243 = vxpose.xlu0.b32.cont [13/16] 0.0, 128
    %244 = vxpose.xlu0.b32.cont [14/16] 0.0, 128
    %245 = vxpose.xlu0.b32.cont [15/16] 0.0, 128
    %246 = vxpose.xlu0.b32.end [16/16] 0.0, 128
    %v247 = vpop.trf.xlu0
    %v248 = vpop.trf.xlu0
    %v249 = vpop.trf.xlu0
    %v250 = vpop.trf.xlu0
    %v251 = vpop.trf.xlu0
    %v252 = vpop.trf.xlu0
    %v253 = vpop.trf.xlu0
    %v254 = vpop.trf.xlu0
    %v255 = vpop.trf.xlu0
    %v256 = vpop.trf.xlu0
    %v257 = vpop.trf.xlu0
    %v258 = vpop.trf.xlu0
    %v259 = vpop.trf.xlu0
    %v260 = vpop.trf.xlu0
    %v261 = vpop.trf.xlu0
    %v262 = vpop.trf.xlu0
    %263 = vxpose.xlu0.b32.start [1/16] %v37, 128
    %264 = vxpose.xlu0.b32.cont [2/16] %v38, 128
    %265 = vxpose.xlu0.b32.cont [3/16] 0.0, 128
    %266 = vxpose.xlu0.b32.cont [4/16] 0.0, 128
    %267 = vxpose.xlu0.b32.cont [5/16] 0.0, 128
    %268 = vxpose.xlu0.b32.cont [6/16] 0.0, 128
    %269 = vxpose.xlu0.b32.cont [7/16] 0.0, 128
    %270 = vxpose.xlu0.b32.cont [8/16] 0.0, 128
    %271 = vxpose.xlu0.b32.cont [9/16] 0.0, 128
    %272 = vxpose.xlu0.b32.cont [10/16] 0.0, 128
    %273 = vxpose.xlu0.b32.cont [11/16] 0.0, 128
    %274 = vxpose.xlu0.b32.cont [12/16] 0.0, 128
    %275 = vxpose.xlu0.b32.cont [13/16] 0.0, 128
    %276 = vxpose.xlu0.b32.cont [14/16] 0.0, 128
    %277 = vxpose.xlu0.b32.cont [15/16] 0.0, 128
    %278 = vxpose.xlu0.b32.end [16/16] 0.0, 128
    %v279 = vpop.trf.xlu0
    %v280 = vpop.trf.xlu0
    %v281 = vpop.trf.xlu0
    %v282 = vpop.trf.xlu0
    %v283 = vpop.trf.xlu0
    %v284 = vpop.trf.xlu0
    %v285 = vpop.trf.xlu0
    %v286 = vpop.trf.xlu0
    %v287 = vpop.trf.xlu0
    %v288 = vpop.trf.xlu0
    %v289 = vpop.trf.xlu0
    %v290 = vpop.trf.xlu0
    %v291 = vpop.trf.xlu0
    %v292 = vpop.trf.xlu0
    %v293 = vpop.trf.xlu0
    %v294 = vpop.trf.xlu0
    %v295 = vadd.f32 %v23, %v55
    %v296 = vadd.f32 %v24, %v56
    %v297 = vadd.f32 %v25, %v87
    %v298 = vadd.f32 %v26, %v88
    %v299 = vadd.f32 %v27, %v119
    %v300 = vadd.f32 %v28, %v120
    %v301 = vadd.f32 %v29, %v151
    %v302 = vadd.f32 %v30, %v152
    %v303 = vadd.f32 %v31, %v183
    %v304 = vadd.f32 %v32, %v184
    %v305 = vadd.f32 %v33, %v215
    %v306 = vadd.f32 %v34, %v216
    %v307 = vadd.f32 %v35, %v247
    %v308 = vadd.f32 %v36, %v248
    %v309 = vadd.f32 %v37, %v279
    %v310 = vadd.f32 %v38, %v280
    %v311 = vmul.f32 %v295, 0.5
    %v312 = vmul.f32 %v296, 0.5
    %v313 = vmul.f32 %v297, 0.5
    %v314 = vmul.f32 %v298, 0.5
    %v315 = vmul.f32 %v299, 0.5
    %v316 = vmul.f32 %v300, 0.5
    %v317 = vmul.f32 %v301, 0.5
    %v318 = vmul.f32 %v302, 0.5
    %v319 = vmul.f32 %v303, 0.5
    %v320 = vmul.f32 %v304, 0.5
    %v321 = vmul.f32 %v305, 0.5
    %v322 = vmul.f32 %v306, 0.5
    %v323 = vmul.f32 %v307, 0.5
    %v324 = vmul.f32 %v308, 0.5
    %v325 = vmul.f32 %v309, 0.5
    %v326 = vmul.f32 %v310, 0.5
    %vm327 = vcmask 130048
    %328 = vst.msk [vmem:[#allocation5] sm:$0xff] %vm327, %v311
    %329 = vst.msk [vmem:[#allocation5 + $0x8] sm:$0xff] %vm327, %v312
    %330 = vst.msk [vmem:[#allocation5 + $0x10] sm:$0xff] %vm327, %v313
    %331 = vst.msk [vmem:[#allocation5 + $0x18] sm:$0xff] %vm327, %v314
    %332 = vst.msk [vmem:[#allocation5 + $0x20] sm:$0xff] %vm327, %v315
    %333 = vst.msk [vmem:[#allocation5 + $0x28] sm:$0xff] %vm327, %v316
    %334 = vst.msk [vmem:[#allocation5 + $0x30] sm:$0xff] %vm327, %v317
    %335 = vst.msk [vmem:[#allocation5 + $0x38] sm:$0xff] %vm327, %v318
    %336 = vst.msk [vmem:[#allocation5 + $0x40] sm:$0xff] %vm327, %v319
    %337 = vst.msk [vmem:[#allocation5 + $0x48] sm:$0xff] %vm327, %v320
    %338 = vst.msk [vmem:[#allocation5 + $0x50] sm:$0xff] %vm327, %v321
    %339 = vst.msk [vmem:[#allocation5 + $0x58] sm:$0xff] %vm327, %v322
    %340 = vst.msk [vmem:[#allocation5 + $0x60] sm:$0xff] %vm327, %v323
    %341 = vst.msk [vmem:[#allocation5 + $0x68] sm:$0xff] %vm327, %v324
    %342 = vst.msk [vmem:[#allocation5 + $0x70] sm:$0xff] %vm327, %v325
    %343 = vst.msk [vmem:[#allocation5 + $0x78] sm:$0xff] %vm327, %v326
    // Predicated region
    $region10: #{tpu_custom_call.1} parent=1 // pred_check
      _
    $region11: #{tpu_custom_call.1} parent=1 // pred_check_branch
      %345 = sbr.rel (0) target = $region13
    $region12: #{tpu_custom_call.1} parent=1 // pred_region
      %s347 = ssub.s32 2048, 2048
      %348 = vsyncadd [#allocation4], %s347
      %s349 = sshll.u32 [#allocation5], 4
      %s350 = int_to_ptr.vmem [resolvable:$true] %s349
      %355 = dma.vmem_to_hbm [thread:$0]  %s350, 2048, %s1, [#allocation4], 128, 128, 8
    $region13: #{tpu_custom_call.1} parent=1 // pred_fallthru
      _
    // Predicated region
    $region14: #{tpu_custom_call.1} parent=1 // pred_check
      _
    $region15: #{tpu_custom_call.1} parent=1 // pred_check_branch
      %357 = sbr.rel (0) target = $region17
    $region16: #{tpu_custom_call.1} parent=1 // pred_region
      %358 = dma.done [#allocation4], 2048
    $region17: #{tpu_custom_call.1} parent=1 // pred_fallthru
      _
    %359 = vsyncpa [#allocation3], 1
    %360 = vsyncpa [#allocation4], 1

</llo_original>
